<compile_context>
chip_gen: v7x
topology: tpu7x:2x2x1
jax: 0.10.0
libtpu: 0.0.40
codegen_flags: <defaults>
</compile_context>

<pallas_src>
import jax
import jax.numpy as jnp
from jax.experimental import pallas as pl
from jax.experimental.pallas import tpu as pltpu


def _add_pos_kernel(x_ref, proj_ref, out_ref):
    # x_ref / out_ref: (TB, TR, L) in x.dtype ; proj_ref: (TR, L) float32.
    # Single VPU add (broadcast over the leading batch tile), full-width store.
    out_ref[...] = (x_ref[...].astype(jnp.float32) + proj_ref[...]).astype(out_ref.dtype)


def _vmem_physical_bytes():
    # Generation-aware VMEM capacity (64 MiB per-TC on v7x, 128 MiB on v5e/v6e).
    try:
        info = pltpu.get_tpu_info()
        cap = getattr(info, "vmem_capacity_bytes", None)
        if cap:
            return int(cap)
    except Exception:
        pass
    return 64 << 20  # conservative default (v7x-sized)


def positional_encoding_2d(x, weight, bias):
    """x: (B, C, H, W); weight: (C, 4) squeezed 1x1-conv weights; bias: (C,)."""
    B, C, H, W = x.shape
    assert weight.shape == (C, 4) and bias.shape == (C,)
    HW = H * W
    N = C * HW
    itemsize = jnp.dtype(x.dtype).itemsize

    # ---- positional ramps + hoisted 1x1 conv (float32, once, amortized over B)
    ys = jnp.linspace(0.0, 1.0, H, dtype=jnp.float32)
    xs = jnp.linspace(0.0, 1.0, W, dtype=jnp.float32)
    north = jnp.broadcast_to((1.0 - ys)[:, None], (H, W))
    south = jnp.broadcast_to(ys[:, None], (H, W))
    west = jnp.broadcast_to((1.0 - xs)[None, :], (H, W))
    east = jnp.broadcast_to(xs[None, :], (H, W))
    pos = jnp.stack([north, south, west, east], axis=0).reshape(4, HW)            # (4, HW)
    proj = weight.astype(jnp.float32) @ pos + bias.astype(jnp.float32)[:, None]   # (C, HW) f32

    # ---- lane-dense re-view: (B, R, L) with L a multiple of 128 when possible
    if N % 128 == 0:
        L, R = 128, N // 128
    else:
        # Fallback for odd shapes: whole (C, HW) rows (block == full array dims).
        L, R = HW, C
    x3 = x.reshape(B, R, L)            # free row-major metadata reshape
    p2 = proj.reshape(R, L)

    # ---- generation-aware block / VMEM budgets
    phys = _vmem_physical_bytes()
    vmem_cap = min(phys * 3 // 4, 96 << 20)        # ~48 MiB (v7x) / ~96 MiB (v5e/v6e)
    block_cap = max(2 << 20, vmem_cap // 8)        # ~6 MiB (v7x) / ~12 MiB (v5e/v6e)

    row_bytes = L * itemsize
    total_bytes = B * N * itemsize

    if total_bytes <= (2 << 20) and total_bytes <= block_cap:
        # Tiny problem: one block, one grid step — pure launch cost, no tiling.
        TB, TR = B, R
    elif R * row_bytes <= block_cap:
        # Whole per-batch slab per step: one contiguous DMA, batch axis parallel
        # across cores; proj block index is constant so it is not re-fetched.
        TB, TR = 1, R
    else:
        # Tile the row axis in multiples of 8 (full 8x128 tiles, contiguous DMAs).
        TB, TR = 1, R
        if R % 8 == 0:
            max_tr = (block_cap // row_bytes) // 8 * 8
            d = min(max_tr, R)
            while d >= 8 and R % d != 0:
                d -= 8
            if d >= 8:
                TR = d
        # TODO(synk): if R has no multiple-of-8 divisor that fits the block cap we
        # fall back to full rows, which may exceed the scoped-VMEM budget for
        # pathological (huge, non-128-divisible) inputs.

    n_r, n_b = R // TR, B // TB
    grid = (n_r, n_b)                  # batch innermost so the proj tile is reused

    x_blk = TB * TR * L * itemsize
    p_blk = TR * L * 4
    vmem_need = 2 * (2 * x_blk + p_blk) + (2 << 20)
    vmem_limit = int(min(max(vmem_need, 16 << 20), vmem_cap))
    if vmem_need > vmem_limit:
        vmem_limit = int(vmem_need)

    cost = pl.CostEstimate(
        flops=2 * B * N,                                   # one f32 add per element
        transcendentals=0,
        bytes_accessed=2 * B * N * itemsize + N * 4,       # x in/out + proj once
    )

    out = pl.pallas_call(
        _add_pos_kernel,
        out_shape=jax.ShapeDtypeStruct((B, R, L), x.dtype),
        grid_spec=pltpu.PrefetchScalarGridSpec(
            num_scalar_prefetch=0,
            grid=grid,
            in_specs=[
                pl.BlockSpec((TB, TR, L), lambda r, b: (b, r, 0)),
                pl.BlockSpec((TR, L), lambda r, b: (r, 0)),
            ],
            out_specs=pl.BlockSpec((TB, TR, L), lambda r, b: (b, r, 0)),
        ),
        compiler_params=pltpu.CompilerParams(
            dimension_semantics=("parallel", "parallel"),
            vmem_limit_bytes=vmem_limit,
        ),
        cost_estimate=cost,
    )(x3, p2)

    return out.reshape(B, C, H, W)


def _reference(x, weight, bias):
    B, C, H, W = x.shape
    ys = jnp.linspace(0.0, 1.0, H, dtype=jnp.float32)
    xs = jnp.linspace(0.0, 1.0, W, dtype=jnp.float32)
    north = jnp.broadcast_to((1.0 - ys)[:, None], (H, W))
    south = jnp.broadcast_to(ys[:, None], (H, W))
    west = jnp.broadcast_to((1.0 - xs)[None, :], (H, W))
    east = jnp.broadcast_to(xs[None, :], (H, W))
    pos = jnp.stack([north, south, west, east], axis=0)               # (4, H, W)
    proj = jnp.einsum("ck,khw->chw", weight.astype(jnp.float32), pos)
    proj = proj + bias.astype(jnp.float32)[:, None, None]
    return (x.astype(jnp.float32) + proj[None]).astype(x.dtype)


if __name__ == "__main__":
    # module hyperparameters / example input: resolution=(16, 16), channels=4
    B, C, H, W = 2, 4, 16, 16

    key = jax.random.PRNGKey(0)
    kx, kw, kb = jax.random.split(key, 3)
    x = jax.random.normal(kx, (B, C, H, W), dtype=jnp.float32)
    # deterministic init of the 1x1 Conv2d(4 -> C) parameters (spatial dims squeezed)
    weight = jax.random.uniform(kw, (C, 4), dtype=jnp.float32, minval=-0.5, maxval=0.5)
    bias = jax.random.uniform(kb, (C,), dtype=jnp.float32, minval=-0.5, maxval=0.5)

    out = positional_encoding_2d(x, weight, bias)
    out = jax.block_until_ready(out)

    ref = _reference(x, weight, bias)
    assert out.shape == (B, C, H, W)
    assert jnp.allclose(out, ref, atol=1e-5, rtol=1e-5), "mismatch vs reference"

    print("KERNEL_OK")
</pallas_src>

<mosaic_0001>
module attributes {stable_mosaic.version = 11 : i64} {
  func.func @_add_pos_kernel(%arg0: i32, %arg1: i32, %arg2: memref<2x8x128xf32, #tpu.memory_space<vmem>>, %arg3: memref<8x128xf32, #tpu.memory_space<vmem>>, %arg4: memref<2x8x128xf32, #tpu.memory_space<vmem>>) attributes {dimension_semantics = [#tpu.dimension_semantics<parallel>, #tpu.dimension_semantics<parallel>], iteration_bounds = array<i64: 1, 1>, scalar_prefetch = 0 : i64, scratch_operands = 0 : i64, tpu.core_type = #tpu.core_type<tc>, window_params = [{transform_indices = @transform_0, window_bounds = array<i64: 2, 8, 128>}, {transform_indices = @transform_1, window_bounds = array<i64: 8, 128>}, {transform_indices = @transform_2, window_bounds = array<i64: 2, 8, 128>}]} {
    %c0 = arith.constant 0 : index
    %c0_0 = arith.constant 0 : index
    %c0_1 = arith.constant 0 : index
    %0 = vector.load %arg2[%c0, %c0_0, %c0_1] : memref<2x8x128xf32, #tpu.memory_space<vmem>>, vector<2x8x128xf32>
    %c0_2 = arith.constant 0 : index
    %c0_3 = arith.constant 0 : index
    %1 = vector.load %arg3[%c0_2, %c0_3] : memref<8x128xf32, #tpu.memory_space<vmem>>, vector<8x128xf32>
    %2 = vector.shape_cast %1 : vector<8x128xf32> to vector<1x8x128xf32>
    %3 = vector.broadcast %2 : vector<1x8x128xf32> to vector<2x8x128xf32>
    %4 = arith.addf %0, %3 : vector<2x8x128xf32>
    %c0_4 = arith.constant 0 : index
    %c0_5 = arith.constant 0 : index
    %c0_6 = arith.constant 0 : index
    %5 = vector.load %arg4[%c0_4, %c0_5, %c0_6] : memref<2x8x128xf32, #tpu.memory_space<vmem>>, vector<2x8x128xf32>
    tpu.vector_store %arg4[%c0_4, %c0_5, %c0_6], %4 {strides = array<i32>} : memref<2x8x128xf32, #tpu.memory_space<vmem>>, vector<2x8x128xf32>,
    return
  }
  func.func @transform_0(%arg0: i32, %arg1: i32) -> (i32, i32, i32) {
    %c0_i32 = arith.constant 0 : i32
    %c0_i32_0 = arith.constant 0 : i32
    return %arg1, %arg0, %c0_i32 : i32, i32, i32
  }
  func.func @transform_1(%arg0: i32, %arg1: i32) -> (i32, i32) {
    %c0_i32 = arith.constant 0 : i32
    %c0_i32_0 = arith.constant 0 : i32
    return %arg0, %c0_i32 : i32, i32
  }
  func.func @transform_2(%arg0: i32, %arg1: i32) -> (i32, i32, i32) {
    %c0_i32 = arith.constant 0 : i32
    %c0_i32_0 = arith.constant 0 : i32
    return %arg1, %arg0, %c0_i32 : i32, i32, i32
  }
}

</mosaic_0001>

<llo_original>
// kernel: tpu_custom_call.1
$region0: #{tpu_custom_call.1}
  #allocation0 [shape = 'u32[]', space=smem, size = 0x4, offset = 0x4, fixed_abs, tag = 'smem constant byte address 0x4 - core index']
  #allocation1 [shape = 'u32[144,128]{1,0:T(1,128)}', space=vmem, size = 0x12000, scoped, tag = 'internal scratch']
  %s0 = inlined_call_operand.hbm [shape: f32[2,8,128], index: 0, kind: input, shape index: {}]
  %s1 = inlined_call_operand.hbm [shape: f32[8,128], index: 1, kind: input, shape index: {}]
  %s2 = inlined_call_operand.hbm [shape: f32[2,8,128], index: 2, kind: output, shape index: {}]
  %s3 = sld [smem:[#allocation0]]
  $region26: #{tpu_custom_call.1} parent=0
    _
  %s5 = ssub.s32 1, %s3
  %s6 = scalar_select 0, %s5, %s3
  $region1: #{tpu_custom_call.1} parent=0
    #allocation2 [shape = 'u8[8192]{0}', space=vmem, size = 0x2000, scoped, tag = 'input window, operand 0, single buffered']
    #allocation3 [shape = 's32[1]{0}', space=sflag, size = 0x4, scoped, tag = 'scoped memory for tpu_custom_call.1']
    #allocation4 [shape = 's32[1]{0}', space=sflag, size = 0x4, scoped, tag = 'scoped memory for tpu_custom_call.1']
    #allocation5 [shape = 'u8[4096]{0}', space=vmem, size = 0x1000, scoped, tag = 'input window, operand 1, single buffered']
    #allocation6 [shape = 's32[1]{0}', space=sflag, size = 0x4, scoped, tag = 'scoped memory for tpu_custom_call.1']
    #allocation7 [shape = 'u8[8192]{0}', space=vmem, size = 0x2000, scoped, tag = 'output window, operand 0, single buffered']
    %7 = vsyncpa [#allocation3], 0
    %8 = vsyncpa [#allocation6], 0
    %9 = vsyncpa [#allocation4], 0
    // Predicated region
    $region2: #{tpu_custom_call.1} parent=1 // pred_check
      _
    $region3: #{tpu_custom_call.1} parent=1 // pred_check_branch
      %11 = sbr.rel (0) target = $region5
    $region4: #{tpu_custom_call.1} parent=1 // pred_region
      %s13 = ssub.s32 256, 256
      %14 = vsyncadd [#allocation3], %s13
      %s15 = sshll.u32 [#allocation2], 4
      %s16 = int_to_ptr.vmem [resolvable:$true] %s15
      %21 = dma.hbm_to_vmem [thread:$0]  %s0, 256, %s16, [#allocation3], 128, 128, 8
    $region5: #{tpu_custom_call.1} parent=1 // pred_fallthru
      _
    // Predicated region
    $region6: #{tpu_custom_call.1} parent=1 // pred_check
      _
    $region7: #{tpu_custom_call.1} parent=1 // pred_check_branch
      %23 = sbr.rel (0) target = $region9
    $region8: #{tpu_custom_call.1} parent=1 // pred_region
      %s25 = ssub.s32 128, 128
      %26 = vsyncadd [#allocation6], %s25
      %s28 = sshll.u32 [#allocation5], 4
      %s29 = int_to_ptr.vmem [resolvable:$true] %s28
      %31 = dma.hbm_to_vmem [thread:$0]  %s1, 128, %s29, [#allocation6]
    $region9: #{tpu_custom_call.1} parent=1 // pred_fallthru
      _
    // Predicated region
    $region10: #{tpu_custom_call.1} parent=1 // pred_check
      _
    $region11: #{tpu_custom_call.1} parent=1 // pred_check_branch
      %33 = sbr.rel (0) target = $region13
    $region12: #{tpu_custom_call.1} parent=1 // pred_region
      %34 = dma.done [#allocation3], 256
    $region13: #{tpu_custom_call.1} parent=1 // pred_fallthru
      _
    // Predicated region
    $region14: #{tpu_custom_call.1} parent=1 // pred_check
      _
    $region15: #{tpu_custom_call.1} parent=1 // pred_check_branch
      %36 = sbr.rel (0) target = $region17
    $region16: #{tpu_custom_call.1} parent=1 // pred_region
      %37 = dma.done [#allocation6], 128
    $region17: #{tpu_custom_call.1} parent=1 // pred_fallthru
      _
    %v38 = vld [vmem:[#allocation2] sm:$0xff]
    %v39 = vld [vmem:[#allocation2 + $0x8] sm:$0xff]
    %v40 = vld [vmem:[#allocation5] sm:$0xff]
    %v41 = vadd.f32 %v38, %v40
    %v42 = vadd.f32 %v39, %v40
    %43 = vst [vmem:[#allocation7] sm:$0xff] %v41
    %44 = vst [vmem:[#allocation7 + $0x8] sm:$0xff] %v42
    // Predicated region
    $region18: #{tpu_custom_call.1} parent=1 // pred_check
      _
    $region19: #{tpu_custom_call.1} parent=1 // pred_check_branch
      %46 = sbr.rel (0) target = $region21
    $region20: #{tpu_custom_call.1} parent=1 // pred_region
      %s48 = ssub.s32 256, 256
      %49 = vsyncadd [#allocation4], %s48
      %s50 = sshll.u32 [#allocation7], 4
      %s51 = int_to_ptr.vmem [resolvable:$true] %s50
      %56 = dma.vmem_to_hbm [thread:$0]  %s51, 256, %s2, [#allocation4], 128, 128, 8
    $region21: #{tpu_custom_call.1} parent=1 // pred_fallthru
      _
    // Predicated region
    $region22: #{tpu_custom_call.1} parent=1 // pred_check
      _
    $region23: #{tpu_custom_call.1} parent=1 // pred_check_branch
      %58 = sbr.rel (0) target = $region25
    $region24: #{tpu_custom_call.1} parent=1 // pred_region
      %59 = dma.done [#allocation4], 256
    $region25: #{tpu_custom_call.1} parent=1 // pred_fallthru
      _
    %60 = vsyncpa [#allocation3], 1
    %61 = vsyncpa [#allocation6], 1
    %62 = vsyncpa [#allocation4], 1

</llo_original>
